<compile_context>
chip_gen: v5e
topology: v5e:2x2
jax: 0.10.0
libtpu: 0.0.40
codegen_flags: <defaults>
</compile_context>

<pallas_src>
import functools

import jax
import jax.numpy as jnp
from jax import lax
from jax.experimental import pallas as pl
from jax.experimental.pallas import tpu as pltpu


def _round_up(x, m):
    return ((x + m - 1) // m) * m


def _pick_chunk(T, cap=64):
    for c in range(min(cap, T), 7, -1):
        if c % 8 == 0 and T % c == 0:
            return c
    return T


# ----------------------------------------------------------------------------
# Kernel 1a: hoisted LSTM input projection  (T*B, E) @ (E, 8H) + bias
#            -> two lane-dense gate streams (fwd / bwd), bf16 operands, f32 out
# ----------------------------------------------------------------------------
def _gate_proj_kernel(x_ref, wih_ref, b_ref, gf_ref, gb_ref):
    x = x_ref[...].astype(jnp.bfloat16)
    z = jnp.dot(x, wih_ref[...], preferred_element_type=jnp.float32) + b_ref[...]
    h4 = gf_ref.shape[-1]
    gf_ref[...] = z[:, :h4]
    gb_ref[...] = z[:, h4:]


def _lstm_gate_projection(x_tm, params):
    """x_tm: (T, B, E) f32 -> (gates_fwd, gates_bwd) each (T, B, 4H) f32."""
    T, B, E = x_tm.shape
    H = params["whh_f"].shape[0]
    H4 = 4 * H
    wih = jnp.concatenate([params["wih_f"], params["wih_b"]],
                          axis=1).astype(jnp.bfloat16)          # (E, 8H)
    bias = jnp.concatenate([params["b_f"], params["b_b"]], axis=1)  # (1, 8H) f32

    TB = T * B
    TM = min(512, _round_up(TB, 8))
    TB_pad = _round_up(TB, TM)
    x2d = x_tm.reshape(TB, E)
    if TB_pad != TB:
        x2d = jnp.pad(x2d, ((0, TB_pad - TB), (0, 0)))

    gf, gb = pl.pallas_call(
        _gate_proj_kernel,
        out_shape=(jax.ShapeDtypeStruct((TB_pad, H4), jnp.float32),
                   jax.ShapeDtypeStruct((TB_pad, H4), jnp.float32)),
        grid=(TB_pad // TM,),
        in_specs=[pl.BlockSpec((TM, E), lambda i: (i, 0)),
                  pl.BlockSpec((E, 2 * H4), lambda i: (0, 0)),
                  pl.BlockSpec((1, 2 * H4), lambda i: (0, 0))],
        out_specs=(pl.BlockSpec((TM, H4), lambda i: (i, 0)),
                   pl.BlockSpec((TM, H4), lambda i: (i, 0))),
        compiler_params=pltpu.CompilerParams(dimension_semantics=("parallel",)),
    )(x2d, wih, bias)
    gf = gf[:TB].reshape(T, B, H4)
    gb = gb[:TB].reshape(T, B, H4)
    return gf, gb


# ----------------------------------------------------------------------------
# Kernel 1b: fused bidirectional recurrence, streamed over T in chunks.
#            Grid (batch-blocks["parallel"], T-chunks["arbitrary"]); carries in scratch.
#            Forward stream reads chunk t, backward stream reads chunk nT-1-t.
# ----------------------------------------------------------------------------
def _bilstm_recurrent_kernel(lens_ref, gf_ref, gb_ref, whh_f_ref, whh_b_ref,
                             out_f_ref, out_b_ref,
                             hf_scr, cf_scr, hb_scr, cb_scr,
                             *, chunk, total_t):
    tc = pl.program_id(1)
    H = whh_f_ref.shape[0]

    @pl.when(tc == 0)
    def _():
        hf_scr[...] = jnp.zeros_like(hf_scr)
        cf_scr[...] = jnp.zeros_like(cf_scr)
        hb_scr[...] = jnp.zeros_like(hb_scr)
        cb_scr[...] = jnp.zeros_like(cb_scr)

    lens = lens_ref[...]                       # (Bblk, 1) int32
    whh_f = whh_f_ref[...]
    whh_b = whh_b_ref[...]
    base = tc * chunk

    def gates_to_hc(pre, c):
        ig = jax.nn.sigmoid(pre[:, 0 * H:1 * H])
        fg = jax.nn.sigmoid(pre[:, 1 * H:2 * H])
        gg = jnp.tanh(pre[:, 2 * H:3 * H])
        og = jax.nn.sigmoid(pre[:, 3 * H:4 * H])
        c_new = fg * c + ig * gg
        return og * jnp.tanh(c_new), c_new

    def step(i, carry):
        del carry
        # ---- forward direction at global time t = base + i.  Carry is intentionally
        #      NOT length-gated: padding is strictly trailing, padded outputs are
        #      zeroed and the final forward state is never used.
        t_glob = base + i
        pre_f = gf_ref[i] + jnp.dot(hf_scr[...], whh_f,
                                    preferred_element_type=jnp.float32)
        h_f, c_f = gates_to_hc(pre_f, cf_scr[...])
        out_f_ref[i] = jnp.where(t_glob < lens, h_f, 0.0).astype(out_f_ref.dtype)
        hf_scr[...] = h_f
        cf_scr[...] = c_f

        # ---- backward direction at global time s = total_t - 1 - t (carry gated so the
        #      state stays zero through the padded tail == packed-seq start at length-1)
        j = chunk - 1 - i
        s_glob = total_t - 1 - t_glob
        pre_b = gb_ref[j] + jnp.dot(hb_scr[...], whh_b,
                                    preferred_element_type=jnp.float32)
        h_b_new, c_b_new = gates_to_hc(pre_b, cb_scr[...])
        m_b = s_glob < lens
        h_b = jnp.where(m_b, h_b_new, hb_scr[...])
        c_b = jnp.where(m_b, c_b_new, cb_scr[...])
        out_b_ref[j] = jnp.where(m_b, h_b, 0.0).astype(out_b_ref.dtype)
        hb_scr[...] = h_b
        cb_scr[...] = c_b
        return 0

    lax.fori_loop(0, chunk, step, 0, unroll=2)


def bilstm_forward(x, lengths, params):
    """x: (B, T, E) f32, lengths: (B,) int32 -> (h_fwd, h_bwd) each (T, B, H) f32."""
    B, T, E = x.shape
    H = params["whh_f"].shape[0]

    # input projection on the (small) time-major input; gates streamed afterwards
    x_tm = jnp.transpose(x, (1, 0, 2))                         # (T, B, E)
    gf, gb = _lstm_gate_projection(x_tm, params)               # (T, B, 4H) x2

    chunk = _pick_chunk(T)
    nT = T // chunk
    Bblk = B if B < 8 else 8
    assert B % Bblk == 0
    nb = B // Bblk

    lens2 = lengths.astype(jnp.int32).reshape(B, 1)
    kernel = functools.partial(_bilstm_recurrent_kernel, chunk=chunk, total_t=T)

    out_f, out_b = pl.pallas_call(
        kernel,
        out_shape=(jax.ShapeDtypeStruct((T, B, H), jnp.float32),
                   jax.ShapeDtypeStruct((T, B, H), jnp.float32)),
        grid=(nb, nT),
        in_specs=[
            pl.BlockSpec((Bblk, 1), lambda b, t: (b, 0)),                   # lengths
            pl.BlockSpec((chunk, Bblk, 4 * H), lambda b, t: (t, b, 0)),     # fwd gates
            pl.BlockSpec((chunk, Bblk, 4 * H),
                         lambda b, t: (nT - 1 - t, b, 0)),                  # bwd gates
            pl.BlockSpec((H, 4 * H), lambda b, t: (0, 0)),                  # Whh fwd
            pl.BlockSpec((H, 4 * H), lambda b, t: (0, 0)),                  # Whh bwd
        ],
        out_specs=(pl.BlockSpec((chunk, Bblk, H), lambda b, t: (t, b, 0)),
                   pl.BlockSpec((chunk, Bblk, H), lambda b, t: (nT - 1 - t, b, 0))),
        scratch_shapes=[pltpu.VMEM((Bblk, H), jnp.float32)] * 4,
        compiler_params=pltpu.CompilerParams(
            dimension_semantics=("parallel", "arbitrary")),
    )(lens2, gf, gb, params["whh_f"], params["whh_b"])
    return out_f, out_b


# ----------------------------------------------------------------------------
# Kernel 2a: Q/K/V head projection, hoisted out of the attention band loop.
#            Outputs head-major (B, NH, T, dh) bf16; scale folded into Q weights.
# ----------------------------------------------------------------------------
def _qkv_proj_kernel(y_ref, wq_ref, bq_ref, wk_ref, bk_ref, wv_ref, bv_ref,
                     q_ref, k_ref, v_ref):
    x = y_ref[0].astype(jnp.bfloat16)                          # (TM, D)

    def proj(w_ref, b_ref):
        z = jnp.dot(x, w_ref[0], preferred_element_type=jnp.float32) + b_ref[0]
        return z.astype(jnp.bfloat16)

    q_ref[0, 0] = proj(wq_ref, bq_ref)
    k_ref[0, 0] = proj(wk_ref, bk_ref)
    v_ref[0, 0] = proj(wv_ref, bv_ref)


# ----------------------------------------------------------------------------
# Kernel 2b: banded (sliding-window) MHA with online softmax + residual +
#            LayerNorm + classifier head, over pre-projected Q/K/V.
# ----------------------------------------------------------------------------
def _banded_attn_kernel(lens_ref,                              # scalar prefetch (SMEM)
                        y_ref, q_ref, k_ref, v_ref,
                        wo_ref, bo_ref, gamma_ref, beta_ref, wc_ref, bc_ref,
                        out_ref,
                        m_scr, l_scr, acc_scr,
                        *, nheads, window, eps, r, w_tiles, nkt):
    b = pl.program_id(0)
    qi = pl.program_id(1)
    kb = pl.program_id(2)
    nkb = pl.num_programs(2)

    NH = nheads
    TQ = q_ref.shape[2]
    TK = k_ref.shape[2]
    dh = q_ref.shape[3]
    D = y_ref.shape[2]
    length = lens_ref[b]

    raw_kt = qi * r - w_tiles + kb
    valid = jnp.logical_and(raw_kt >= 0, raw_kt < nkt)

    # ---- first band step: reset running stats
    @pl.when(kb == 0)
    def _():
        m_scr[...] = jnp.full_like(m_scr, -1e30)
        l_scr[...] = jnp.zeros_like(l_scr)
        acc_scr[...] = jnp.zeros_like(acc_scr)

    # ---- heavy work only for band steps that intersect the key range
    @pl.when(valid)
    def _():
        q = q_ref[0]                                           # (NH, TQ, dh) bf16
        k = k_ref[0]                                           # (NH, TK, dh) bf16
        v = v_ref[0]
        s = lax.dot_general(q, k, (((2,), (2,)), ((0,), (0,))),
                            preferred_element_type=jnp.float32)  # (NH, TQ, TK)

        # additive band/length mask (single bias add, broadcast over heads)
        qpos = qi * TQ + lax.broadcasted_iota(jnp.int32, (TQ, TK), 0)
        kpos = raw_kt * TK + lax.broadcasted_iota(jnp.int32, (TQ, TK), 1)
        inband = (jnp.abs(qpos - kpos) <= window) & (kpos < length)
        bias = (inband.astype(jnp.float32) - 1.0) * 1e30
        s = s + bias[None]

        m_prev = m_scr[...]                                    # (NH, TQ)
        m_new = jnp.maximum(m_prev, jnp.max(s, axis=-1))
        alpha = jnp.exp(m_prev - m_new)
        p = jnp.exp(s - m_new[..., None])
        l_scr[...] = alpha * l_scr[...] + jnp.sum(p, axis=-1)
        acc_scr[...] = alpha[..., None] * acc_scr[...] + lax.dot_general(
            p.astype(v.dtype), v, (((2,), (1,)), ((0,), (0,))),
            preferred_element_type=jnp.float32)
        m_scr[...] = m_new

    # ---- last band step: out-proj + residual + LayerNorm + classifier
    @pl.when(kb == nkb - 1)
    def _():
        inv_l = pl.reciprocal(l_scr[...], approx=False)        # (NH, TQ) exact
        ctx = acc_scr[...] * inv_l[..., None]                  # (NH, TQ, dh) f32
        # concat(heads) @ Wo == sum_h ctx[h] @ Wo[h*dh:(h+1)*dh]; accumulate into one
        # (TQ, D) value instead of materializing an (NH, TQ, D) temp.
        attn = jnp.zeros((TQ, D), jnp.float32)
        for h in range(NH):                                    # finalize-only, NH small
            attn = attn + jnp.dot(ctx[h].astype(jnp.bfloat16),
                                  wo_ref[h * dh:(h + 1) * dh, :],
                                  preferred_element_type=jnp.float32)
        attn = attn + bo_ref[...]

        z = y_ref[0] + attn                                    # residual (f32)
        mu = jnp.mean(z, axis=-1, keepdims=True)
        var = jnp.mean((z - mu) ** 2, axis=-1, keepdims=True)
        zn = (z - mu) * lax.rsqrt(var + eps)
        zn = zn * gamma_ref[...] + beta_ref[...]

        logits = jnp.dot(zn.astype(jnp.bfloat16), wc_ref[...],
                         preferred_element_type=jnp.float32) + bc_ref[...]
        out_ref[0] = logits.astype(out_ref.dtype)              # lane-dense (TQ, 128)


def local_attention_forward(y, lengths, params, *, nheads, window, eps=1e-12,
                            q_tile=64, k_tile=None):
    B, T, D = y.shape
    NH = nheads
    assert D % NH == 0
    dh = D // NH
    if k_tile is None:
        k_tile = q_tile
    assert q_tile % k_tile == 0 and q_tile % 8 == 0 and k_tile % 8 == 0
    tagset = params["wc"].shape[1]
    P = 128                                                    # lane-dense padded logits
    assert tagset <= P

    # pad T up to a q_tile multiple (handles seq_len not divisible by the tile;
    # padded keys are masked by the kpos < length condition, output sliced back)
    T_pad = _round_up(T, q_tile)
    if T_pad != T:
        y = jnp.pad(y, ((0, 0), (0, T_pad - T), (0, 0)))

    NQ = T_pad // q_tile
    NKT = T_pad // k_tile
    r = q_tile // k_tile
    w_tiles = pl.cdiv(window, k_tile)
    NKB = r + 2 * w_tiles                                      # band steps per q tile

    scale = 1.0 / (dh ** 0.5)

    def head_w(w):                                             # (D, D) -> (NH, D, dh)
        return w.reshape(D, NH, dh).transpose(1, 0, 2)

    wq_h = (head_w(params["wq"]) * scale).astype(jnp.bfloat16)
    wk_h = head_w(params["wk"]).astype(jnp.bfloat16)
    wv_h = head_w(params["wv"]).astype(jnp.bfloat16)
    bq_h = (params["bq"].reshape(NH, 1, dh) * scale).astype(jnp.float32)
    bk_h = params["bk"].reshape(NH, 1, dh).astype(jnp.float32)
    bv_h = params["bv"].reshape(NH, 1, dh).astype(jnp.float32)
    wo = params["wo"].astype(jnp.bfloat16)                     # (D, D)
    wc_pad = jnp.pad(params["wc"], ((0, 0), (0, P - tagset))).astype(jnp.bfloat16)
    bc_pad = jnp.pad(params["bc"], ((0, 0), (0, P - tagset)))

    # ---- Q/K/V head projection (once per element, not once per band step)
    ymap = lambda b, t, h: (b, t, 0)
    wmap = lambda b, t, h: (h, 0, 0)
    omap = lambda b, t, h: (b, h, t, 0)
    hm_shape = jax.ShapeDtypeStruct((B, NH, T_pad, dh), jnp.bfloat16)
    q_hm, k_hm, v_hm = pl.pallas_call(
        _qkv_proj_kernel,
        out_shape=(hm_shape, hm_shape, hm_shape),
        grid=(B, NQ, NH),                                      # heads innermost -> y DMA dedup
        in_specs=[pl.BlockSpec((1, q_tile, D), ymap),
                  pl.BlockSpec((1, D, dh), wmap), pl.BlockSpec((1, 1, dh), wmap),
                  pl.BlockSpec((1, D, dh), wmap), pl.BlockSpec((1, 1, dh), wmap),
                  pl.BlockSpec((1, D, dh), wmap), pl.BlockSpec((1, 1, dh), wmap)],
        out_specs=(pl.BlockSpec((1, 1, q_tile, dh), omap),) * 3,
        compiler_params=pltpu.CompilerParams(
            dimension_semantics=("parallel", "parallel", "arbitrary")),
    )(y, wq_h, bq_h, wk_h, bk_h, wv_h, bv_h)

    # ---- banded attention
    kernel = functools.partial(_banded_attn_kernel, nheads=NH, window=window,
                               eps=eps, r=r, w_tiles=w_tiles, nkt=NKT)

    ymapq = lambda b, qi, kb, lens: (b, qi, 0)
    qmap = lambda b, qi, kb, lens: (b, 0, qi, 0)
    kvmap = lambda b, qi, kb, lens: (b, 0, jnp.clip(qi * r - w_tiles + kb, 0, NKT - 1), 0)
    w2 = lambda b, qi, kb, lens: (0, 0)

    out_padded = pl.pallas_call(
        kernel,
        out_shape=jax.ShapeDtypeStruct((B, T_pad, P), jnp.float32),
        grid_spec=pltpu.PrefetchScalarGridSpec(
            num_scalar_prefetch=1,
            grid=(B, NQ, NKB),
            in_specs=[
                pl.BlockSpec((1, q_tile, D), ymapq),           # y (residual, f32)
                pl.BlockSpec((1, NH, q_tile, dh), qmap),       # Q (pre-scaled, bf16)
                pl.BlockSpec((1, NH, k_tile, dh), kvmap),      # K band tile
                pl.BlockSpec((1, NH, k_tile, dh), kvmap),      # V band tile
                pl.BlockSpec((D, D), w2),                      # Wo
                pl.BlockSpec((1, D), w2),                      # bo
                pl.BlockSpec((1, D), w2),                      # gamma
                pl.BlockSpec((1, D), w2),                      # beta
                pl.BlockSpec((D, P), w2),                      # Wc (padded lanes)
                pl.BlockSpec((1, P), w2),                      # bc (padded)
            ],
            out_specs=pl.BlockSpec((1, q_tile, P), ymapq),
            scratch_shapes=[
                pltpu.VMEM((NH, q_tile), jnp.float32),         # running max   (2-D)
                pltpu.VMEM((NH, q_tile), jnp.float32),         # running denom (2-D)
                pltpu.VMEM((NH, q_tile, dh), jnp.float32),     # running numerator
            ]),
        compiler_params=pltpu.CompilerParams(
            dimension_semantics=("parallel", "parallel", "arbitrary"),
            vmem_limit_bytes=48 * 1024 * 1024),
    )(lengths.astype(jnp.int32), y, q_hm, k_hm, v_hm,
      wo, params["bo"], params["gamma"], params["beta"], wc_pad, bc_pad)

    return out_padded[:, :T, :tagset]


# ----------------------------------------------------------------------------
# Glue (mirrors RecurrentLongformerBlock.forward, sep_fb=False / just_mha=True)
# ----------------------------------------------------------------------------
def pad_to_window_multiple(x, max_length):
    B, T, F = x.shape
    if T >= max_length:
        return x[:, :max_length]
    return jnp.pad(x, ((0, 0), (0, max_length - T), (0, 0)))


def recurrent_longformer_block(inputs, lengths, params, *, nheads, window,
                               max_length, q_tile=64, k_tile=None):
    h_f, h_b = bilstm_forward(inputs, lengths, params)         # (T, B, H) x2
    # one concat + transpose to batch-major for the attention stage
    y = jnp.transpose(jnp.concatenate([h_f, h_b], axis=-1), (1, 0, 2))  # (B, T, 2H)
    y = pad_to_window_multiple(y, max_length)                  # self.pad_to_window_multiple
    return local_attention_forward(y, lengths, params, nheads=nheads,
                                   window=window, q_tile=q_tile, k_tile=k_tile)


def init_params(key, E, H, nheads, tagset):
    D = 2 * H
    keys = jax.random.split(key, 16)

    def w(k, shape, scale=0.1):
        return (scale * jax.random.normal(k, shape)).astype(jnp.float32)

    return dict(
        # LSTM weights pre-transposed to (in, 4H); gate order i, f, g, o
        wih_f=w(keys[0], (E, 4 * H)), whh_f=w(keys[1], (H, 4 * H)), b_f=w(keys[2], (1, 4 * H)),
        wih_b=w(keys[3], (E, 4 * H)), whh_b=w(keys[4], (H, 4 * H)), b_b=w(keys[5], (1, 4 * H)),
        # attention projections
        wq=w(keys[6], (D, D)), bq=w(keys[7], (1, D)),
        wk=w(keys[8], (D, D)), bk=w(keys[9], (1, D)),
        wv=w(keys[10], (D, D)), bv=w(keys[11], (1, D)),
        wo=w(keys[12], (D, D)), bo=w(keys[13], (1, D)),
        # LayerNorm + classifier head
        gamma=jnp.ones((1, D), jnp.float32), beta=jnp.zeros((1, D), jnp.float32),
        wc=w(keys[14], (D, tagset)), bc=w(keys[15], (1, tagset)),
    )


if __name__ == "__main__":
    # small shapes (the real module uses seq_len=3600, window=127)
    B, T, E, H = 2, 128, 16, 32
    NHEADS, WINDOW, TAGSET = 8, 16, 8
    # TODO(synk): window convention assumed |i-j| <= window (width 2*window+1); verify
    # against the reference Longformer_Local_Attention if its source becomes available.

    key = jax.random.PRNGKey(0)
    kx, kp = jax.random.split(key)
    inputs = jax.random.normal(kx, (B, T, E), jnp.float32)
    lengths = jnp.array([T, 90], jnp.int32)
    params = init_params(kp, E, H, NHEADS, TAGSET)

    out = recurrent_longformer_block(inputs, lengths, params,
                                     nheads=NHEADS, window=WINDOW, max_length=T,
                                     q_tile=64, k_tile=32)
    jax.block_until_ready(out)
    assert out.shape == (B, T, TAGSET) and out.dtype == jnp.float32
    print("KERNEL_OK")
</pallas_src>

<mosaic_0001>
module attributes {stable_mosaic.version = 11 : i64} {
  func.func @_gate_proj_kernel(%arg0: i32, %arg1: memref<256x16xf32, #tpu.memory_space<vmem>>, %arg2: memref<16x256xbf16, #tpu.memory_space<vmem>>, %arg3: memref<1x256xf32, #tpu.memory_space<vmem>>, %arg4: memref<256x128xf32, #tpu.memory_space<vmem>>, %arg5: memref<256x128xf32, #tpu.memory_space<vmem>>) attributes {dimension_semantics = [#tpu.dimension_semantics<parallel>], iteration_bounds = array<i64: 1>, scalar_prefetch = 0 : i64, scratch_operands = 0 : i64, tpu.core_type = #tpu.core_type<tc>, window_params = [{transform_indices = @transform_0, window_bounds = array<i64: 256, 16>}, {pipeline_mode = #tpu.pipeline_mode<synchronous>, transform_indices = @transform_1, window_bounds = array<i64: 16, 256>}, {pipeline_mode = #tpu.pipeline_mode<synchronous>, transform_indices = @transform_2, window_bounds = array<i64: 1, 256>}, {transform_indices = @transform_3, window_bounds = array<i64: 256, 128>}, {transform_indices = @transform_4, window_bounds = array<i64: 256, 128>}]} {
    %c0 = arith.constant 0 : index
    %c0_0 = arith.constant 0 : index
    %0 = vector.load %arg1[%c0, %c0_0] : memref<256x16xf32, #tpu.memory_space<vmem>>, vector<256x16xf32>
    %1 = arith.truncf %0 : vector<256x16xf32> to vector<256x16xbf16>
    %c0_1 = arith.constant 0 : index
    %c0_2 = arith.constant 0 : index
    %2 = vector.load %arg2[%c0_1, %c0_2] : memref<16x256xbf16, #tpu.memory_space<vmem>>, vector<16x256xbf16>
    %cst = arith.constant dense<0.000000e+00> : vector<256x256xf32>
    %3 = tpu.matmul %1, %2, %cst {dimension_numbers = #tpu.dot_dimension_numbers<[1], [0], [0], [1], [0, 0, 1, 1], [], []>} : vector<256x16xbf16>, vector<16x256xbf16>, vector<256x256xf32> -> vector<256x256xf32>
    %c0_3 = arith.constant 0 : index
    %c0_4 = arith.constant 0 : index
    %4 = vector.load %arg3[%c0_3, %c0_4] : memref<1x256xf32, #tpu.memory_space<vmem>>, vector<1x256xf32>
    %5 = vector.broadcast %4 : vector<1x256xf32> to vector<256x256xf32>
    %6 = arith.addf %3, %5 : vector<256x256xf32>
    %7 = vector.extract_strided_slice %6 {offsets = [0, 0], sizes = [256, 128], strides = [1, 1]} : vector<256x256xf32> to vector<256x128xf32>
    %c0_5 = arith.constant 0 : index
    %c0_6 = arith.constant 0 : index
    %8 = vector.load %arg4[%c0_5, %c0_6] : memref<256x128xf32, #tpu.memory_space<vmem>>, vector<256x128xf32>
    tpu.vector_store %arg4[%c0_5, %c0_6], %7 {strides = array<i32>} : memref<256x128xf32, #tpu.memory_space<vmem>>, vector<256x128xf32>,
    %9 = vector.extract_strided_slice %6 {offsets = [0, 128], sizes = [256, 128], strides = [1, 1]} : vector<256x256xf32> to vector<256x128xf32>
    %c0_7 = arith.constant 0 : index
    %c0_8 = arith.constant 0 : index
    %10 = vector.load %arg5[%c0_7, %c0_8] : memref<256x128xf32, #tpu.memory_space<vmem>>, vector<256x128xf32>
    tpu.vector_store %arg5[%c0_7, %c0_8], %9 {strides = array<i32>} : memref<256x128xf32, #tpu.memory_space<vmem>>, vector<256x128xf32>,
    return
  }
  func.func @transform_0(%arg0: i32) -> (i32, i32) {
    %c0_i32 = arith.constant 0 : i32
    %c0_i32_0 = arith.constant 0 : i32
    return %arg0, %c0_i32 : i32, i32
  }
  func.func @transform_1(%arg0: i32) -> (i32, i32) {
    %c0_i32 = arith.constant 0 : i32
    %c0_i32_0 = arith.constant 0 : i32
    %c0_i32_1 = arith.constant 0 : i32
    return %c0_i32, %c0_i32_0 : i32, i32
  }
  func.func @transform_2(%arg0: i32) -> (i32, i32) {
    %c0_i32 = arith.constant 0 : i32
    %c0_i32_0 = arith.constant 0 : i32
    %c0_i32_1 = arith.constant 0 : i32
    return %c0_i32, %c0_i32_0 : i32, i32
  }
  func.func @transform_3(%arg0: i32) -> (i32, i32) {
    %c0_i32 = arith.constant 0 : i32
    %c0_i32_0 = arith.constant 0 : i32
    return %arg0, %c0_i32 : i32, i32
  }
  func.func @transform_4(%arg0: i32) -> (i32, i32) {
    %c0_i32 = arith.constant 0 : i32
    %c0_i32_0 = arith.constant 0 : i32
    return %arg0, %c0_i32 : i32, i32
  }
}

</mosaic_0001>

<llo_original>
// kernel: tpu_custom_call.1
$region0: #{tpu_custom_call.1}
  #allocation0 [shape = 'u32[]', space=smem, size = 0x4, offset = 0x4, fixed_abs, tag = 'smem constant byte address 0x4 - core index']
  #allocation1 [shape = 'u32[72,128]{1,0:T(1,128)}', space=vmem, size = 0x9000, scoped, tag = 'internal scratch']
  %s0 = inlined_call_operand.vmem [shape: f32[256,16], index: 0, kind: input, shape index: {}]
  %s1 = inlined_call_operand.vmem [shape: bf16[16,256], index: 1, kind: input, shape index: {}]
  %s2 = inlined_call_operand.vmem [shape: f32[1,256], index: 2, kind: input, shape index: {}]
  %s3 = inlined_call_operand.hbm [shape: f32[256,128], index: 3, kind: output, shape index: {0}]
  %s4 = inlined_call_operand.hbm [shape: f32[256,128], index: 4, kind: output, shape index: {1}]
  %5 = xla_tuple %s3, %s4
  %s6 = sld [smem:[#allocation0]]
  $region30: #{tpu_custom_call.1} parent=0
    _
  %s8 = ssub.s32 1, %s6
  %s9 = scalar_select 0, %s8, %s6
  $region1: #{tpu_custom_call.1} parent=0
    #allocation2 [shape = 'u8[131072]{0}', space=vmem, size = 0x20000, scoped, tag = 'output window, operand 0, single buffered']
    #allocation3 [shape = 's32[1]{0}', space=sflag, size = 0x4, scoped, tag = 'scoped memory for tpu_custom_call.1']
    #allocation4 [shape = 'u8[131072]{0}', space=vmem, size = 0x20000, scoped, tag = 'output window, operand 1, single buffered']
    #allocation5 [shape = 's32[1]{0}', space=sflag, size = 0x4, scoped, tag = 'scoped memory for tpu_custom_call.1']
    %10 = vsyncpa [#allocation3], 0
    %11 = vsyncpa [#allocation5], 0
    // Predicated region
    $region2: #{tpu_custom_call.1} parent=1 // pred_check
      _
    $region3: #{tpu_custom_call.1} parent=1 // pred_check_branch
      %13 = sbr.rel (0) target = $region5
    $region4: #{tpu_custom_call.1} parent=1 // pred_region
      _
    $region5: #{tpu_custom_call.1} parent=1 // pred_fallthru
      _
    // Predicated region
    $region6: #{tpu_custom_call.1} parent=1 // pred_check
      _
    $region7: #{tpu_custom_call.1} parent=1 // pred_check_branch
      %15 = sbr.rel (0) target = $region9
    $region8: #{tpu_custom_call.1} parent=1 // pred_region
      _
    $region9: #{tpu_custom_call.1} parent=1 // pred_fallthru
      _
    // Predicated region
    $region10: #{tpu_custom_call.1} parent=1 // pred_check
      _
    $region11: #{tpu_custom_call.1} parent=1 // pred_check_branch
      %17 = sbr.rel (0) target = $region13
    $region12: #{tpu_custom_call.1} parent=1 // pred_region
      _
    $region13: #{tpu_custom_call.1} parent=1 // pred_fallthru
      _
    %v19 = vld [vmem:[%s0] sm:$0xff]
    %v20 = vld [vmem:[%s0 + $0x8] sm:$0xff]
    %v21 = vld [vmem:[%s0 + $0x10] sm:$0xff]
    %v22 = vld [vmem:[%s0 + $0x18] sm:$0xff]
    %v23 = vld [vmem:[%s0 + $0x20] sm:$0xff]
    %v24 = vld [vmem:[%s0 + $0x28] sm:$0xff]
    %v25 = vld [vmem:[%s0 + $0x30] sm:$0xff]
    %v26 = vld [vmem:[%s0 + $0x38] sm:$0xff]
    %v27 = vld [vmem:[%s0 + $0x40] sm:$0xff]
    %v28 = vld [vmem:[%s0 + $0x48] sm:$0xff]
    %v29 = vld [vmem:[%s0 + $0x50] sm:$0xff]
    %v30 = vld [vmem:[%s0 + $0x58] sm:$0xff]
    %v31 = vld [vmem:[%s0 + $0x60] sm:$0xff]
    %v32 = vld [vmem:[%s0 + $0x68] sm:$0xff]
    %v33 = vld [vmem:[%s0 + $0x70] sm:$0xff]
    %v34 = vld [vmem:[%s0 + $0x78] sm:$0xff]
    %v35 = vld [vmem:[%s0 + $0x80] sm:$0xff]
    %v36 = vld [vmem:[%s0 + $0x88] sm:$0xff]
    %v37 = vld [vmem:[%s0 + $0x90] sm:$0xff]
    %v38 = vld [vmem:[%s0 + $0x98] sm:$0xff]
    %v39 = vld [vmem:[%s0 + $0xa0] sm:$0xff]
    %v40 = vld [vmem:[%s0 + $0xa8] sm:$0xff]
    %v41 = vld [vmem:[%s0 + $0xb0] sm:$0xff]
    %v42 = vld [vmem:[%s0 + $0xb8] sm:$0xff]
    %v43 = vld [vmem:[%s0 + $0xc0] sm:$0xff]
    %v44 = vld [vmem:[%s0 + $0xc8] sm:$0xff]
    %v45 = vld [vmem:[%s0 + $0xd0] sm:$0xff]
    %v46 = vld [vmem:[%s0 + $0xd8] sm:$0xff]
    %v47 = vld [vmem:[%s0 + $0xe0] sm:$0xff]
    %v48 = vld [vmem:[%s0 + $0xe8] sm:$0xff]
    %v49 = vld [vmem:[%s0 + $0xf0] sm:$0xff]
    %v50 = vld [vmem:[%s0 + $0xf8] sm:$0xff]
    %v51 = vpack.c.bf16 %v20, %v19
    %v52 = vpack.c.bf16 %v22, %v21
    %v53 = vpack.c.bf16 %v24, %v23
    %v54 = vpack.c.bf16 %v26, %v25
    %v55 = vpack.c.bf16 %v28, %v27
    %v56 = vpack.c.bf16 %v30, %v29
    %v57 = vpack.c.bf16 %v32, %v31
    %v58 = vpack.c.bf16 %v34, %v33
    %v59 = vpack.c.bf16 %v36, %v35
    %v60 = vpack.c.bf16 %v38, %v37
    %v61 = vpack.c.bf16 %v40, %v39
    %v62 = vpack.c.bf16 %v42, %v41
    %v63 = vpack.c.bf16 %v44, %v43
    %v64 = vpack.c.bf16 %v46, %v45
    %v65 = vpack.c.bf16 %v48, %v47
    %v66 = vpack.c.bf16 %v50, %v49
    %v67 = vld [vmem:[%s1] sm:$0xff]
    %v68 = vld [vmem:[%s1 + $0x8] sm:$0xff]
    %v69 = vld [vmem:[%s2] sm:$0x3]
    %v71 = vperm.slane %v69, 0
    %v72 = vperm.slane %v69, 1
    %v77 = vunpack.c.l.b16 %v67
    %v78 = vunpack.c.h.b16 %v67
    %v79 = vunpack.c.l.b16 %v68
    %v80 = vunpack.c.h.b16 %v68
    %v81 = vpack.c.b16 %v79, %v77
    %v82 = vpack.c.b16 %v80, %v78
    %vm85 = vcmask 130048
    %v87 = vsel %vm85, %v51, 0
    %v90 = vsel %vm85, %v52, 0
    %v93 = vsel %vm85, %v53, 0
    %v96 = vsel %vm85, %v54, 0
    %v99 = vsel %vm85, %v55, 0
    %v102 = vsel %vm85, %v56, 0
    %v105 = vsel %vm85, %v57, 0
    %v108 = vsel %vm85, %v58, 0
    %v111 = vsel %vm85, %v59, 0
    %v114 = vsel %vm85, %v60, 0
    %v117 = vsel %vm85, %v61, 0
    %v120 = vsel %vm85, %v62, 0
    %v123 = vsel %vm85, %v63, 0
    %v126 = vsel %vm85, %v64, 0
    %v129 = vsel %vm85, %v65, 0
    %v132 = vsel %vm85, %v66, 0
    %134 = vmatpush.bf16.msra.mxu0 0
    %135 = vmatpush.bf16.msra.mxu0 0
    %136 = vmatpush.bf16.msra.mxu0 0
    %137 = vmatpush.bf16.msra.mxu0 0
    %138 = vmatpush.bf16.msra.mxu0 0
    %139 = vmatpush.bf16.msra.mxu0 0
    %140 = vmatpush.bf16.msra.mxu0 0
    %141 = vmatpush.bf16.msra.mxu0 %v81
    %142 = vmatmul.bf16.gmra.mxu0 %v87
    %v143 = vpop.f32.mrf.mxu0
    %v144 = vadd.f32 %v71, %v143
    %v145 = vpop.f32.mrf.mxu0
    %v146 = vadd.f32 %v71, %v145
    %147 = vmatmul.bf16.gmra.mxu0 %v90
    %v148 = vpop.f32.mrf.mxu0
    %v149 = vadd.f32 %v71, %v148
    %v150 = vpop.f32.mrf.mxu0
    %v151 = vadd.f32 %v71, %v150
    %152 = vmatmul.bf16.gmra.mxu0 %v93
    %v153 = vpop.f32.mrf.mxu0
    %v154 = vadd.f32 %v71, %v153
    %v155 = vpop.f32.mrf.mxu0
    %v156 = vadd.f32 %v71, %v155
    %157 = vmatmul.bf16.gmra.mxu0 %v96
    %v158 = vpop.f32.mrf.mxu0
    %v159 = vadd.f32 %v71, %v158
    %v160 = vpop.f32.mrf.mxu0
    %v161 = vadd.f32 %v71, %v160
    %162 = vmatmul.bf16.gmra.mxu0 %v99
    %v163 = vpop.f32.mrf.mxu0
    %v164 = vadd.f32 %v71, %v163
    %v165 = vpop.f32.mrf.mxu0
    %v166 = vadd.f32 %v71, %v165
    %167 = vmatmul.bf16.gmra.mxu0 %v102
    %v168 = vpop.f32.mrf.mxu0
    %v169 = vadd.f32 %v71, %v168
    %v170 = vpop.f32.mrf.mxu0
    %v171 = vadd.f32 %v71, %v170
    %172 = vmatmul.bf16.gmra.mxu0 %v105
    %v173 = vpop.f32.mrf.mxu0
    %v174 = vadd.f32 %v71, %v173
    %v175 = vpop.f32.mrf.mxu0
    %v176 = vadd.f32 %v71, %v175
    %177 = vmatmul.bf16.gmra.mxu0 %v108
    %v178 = vpop.f32.mrf.mxu0
    %v179 = vadd.f32 %v71, %v178
    %v180 = vpop.f32.mrf.mxu0
    %v181 = vadd.f32 %v71, %v180
    %182 = vmatmul.bf16.gmra.mxu0 %v111
    %v183 = vpop.f32.mrf.mxu0
    %v184 = vadd.f32 %v71, %v183
    %v185 = vpop.f32.mrf.mxu0
    %v186 = vadd.f32 %v71, %v185
    %187 = vmatmul.bf16.gmra.mxu0 %v114
    %v188 = vpop.f32.mrf.mxu0
    %v189 = vadd.f32 %v71, %v188
    %v190 = vpop.f32.mrf.mxu0
    %v191 = vadd.f32 %v71, %v190
    %192 = vmatmul.bf16.gmra.mxu0 %v117
    %v193 = vpop.f32.mrf.mxu0
    %v194 = vadd.f32 %v71, %v193
    %v195 = vpop.f32.mrf.mxu0
    %v196 = vadd.f32 %v71, %v195
    %197 = vmatmul.bf16.gmra.mxu0 %v120
    %v198 = vpop.f32.mrf.mxu0
    %v199 = vadd.f32 %v71, %v198
    %v200 = vpop.f32.mrf.mxu0
    %v201 = vadd.f32 %v71, %v200
    %202 = vmatmul.bf16.gmra.mxu0 %v123
    %v203 = vpop.f32.mrf.mxu0
    %v204 = vadd.f32 %v71, %v203
    %v205 = vpop.f32.mrf.mxu0
    %v206 = vadd.f32 %v71, %v205
    %207 = vmatmul.bf16.gmra.mxu0 %v126
    %v208 = vpop.f32.mrf.mxu0
    %v209 = vadd.f32 %v71, %v208
    %v210 = vpop.f32.mrf.mxu0
    %v211 = vadd.f32 %v71, %v210
    %212 = vmatmul.bf16.gmra.mxu0 %v129
    %v213 = vpop.f32.mrf.mxu0
    %v214 = vadd.f32 %v71, %v213
    %v215 = vpop.f32.mrf.mxu0
    %v216 = vadd.f32 %v71, %v215
    %217 = vmatmul.bf16.gmra.mxu0 %v132
    %v218 = vpop.f32.mrf.mxu0
    %v219 = vadd.f32 %v71, %v218
    %v220 = vpop.f32.mrf.mxu0
    %v221 = vadd.f32 %v71, %v220
    %222 = vdwg.mxu0
    %223 = vmatpush.bf16.msra.mxu0 0
    %224 = vmatpush.bf16.msra.mxu0 0
    %225 = vmatpush.bf16.msra.mxu0 0
    %226 = vmatpush.bf16.msra.mxu0 0
    %227 = vmatpush.bf16.msra.mxu0 0
    %228 = vmatpush.bf16.msra.mxu0 0
    %229 = vmatpush.bf16.msra.mxu0 0
    %230 = vmatpush.bf16.msra.mxu0 %v82
    %231 = vmatmul.bf16.gmra.mxu0 %v87
    %v232 = vpop.f32.mrf.mxu0
    %v233 = vadd.f32 %v72, %v232
    %v234 = vpop.f32.mrf.mxu0
    %v235 = vadd.f32 %v72, %v234
    %236 = vmatmul.bf16.gmra.mxu0 %v90
    %v237 = vpop.f32.mrf.mxu0
    %v238 = vadd.f32 %v72, %v237
    %v239 = vpop.f32.mrf.mxu0
    %v240 = vadd.f32 %v72, %v239
    %241 = vmatmul.bf16.gmra.mxu0 %v93
    %v242 = vpop.f32.mrf.mxu0
    %v243 = vadd.f32 %v72, %v242
    %v244 = vpop.f32.mrf.mxu0
    %v245 = vadd.f32 %v72, %v244
    %246 = vmatmul.bf16.gmra.mxu0 %v96
    %v247 = vpop.f32.mrf.mxu0
    %v248 = vadd.f32 %v72, %v247
    %v249 = vpop.f32.mrf.mxu0
    %v250 = vadd.f32 %v72, %v249
    %251 = vmatmul.bf16.gmra.mxu0 %v99
    %v252 = vpop.f32.mrf.mxu0
    %v253 = vadd.f32 %v72, %v252
    %v254 = vpop.f32.mrf.mxu0
    %v255 = vadd.f32 %v72, %v254
    %256 = vmatmul.bf16.gmra.mxu0 %v102
    %v257 = vpop.f32.mrf.mxu0
    %v258 = vadd.f32 %v72, %v257
    %v259 = vpop.f32.mrf.mxu0
    %v260 = vadd.f32 %v72, %v259
    %261 = vmatmul.bf16.gmra.mxu0 %v105
    %v262 = vpop.f32.mrf.mxu0
    %v263 = vadd.f32 %v72, %v262
    %v264 = vpop.f32.mrf.mxu0
    %v265 = vadd.f32 %v72, %v264
    %266 = vmatmul.bf16.gmra.mxu0 %v108
    %v267 = vpop.f32.mrf.mxu0
    %v268 = vadd.f32 %v72, %v267
    %v269 = vpop.f32.mrf.mxu0
    %v270 = vadd.f32 %v72, %v269
    %271 = vmatmul.bf16.gmra.mxu0 %v111
    %v272 = vpop.f32.mrf.mxu0
    %v273 = vadd.f32 %v72, %v272
    %v274 = vpop.f32.mrf.mxu0
    %v275 = vadd.f32 %v72, %v274
    %276 = vmatmul.bf16.gmra.mxu0 %v114
    %v277 = vpop.f32.mrf.mxu0
    %v278 = vadd.f32 %v72, %v277
    %v279 = vpop.f32.mrf.mxu0
    %v280 = vadd.f32 %v72, %v279
    %281 = vmatmul.bf16.gmra.mxu0 %v117
    %v282 = vpop.f32.mrf.mxu0
    %v283 = vadd.f32 %v72, %v282
    %v284 = vpop.f32.mrf.mxu0
    %v285 = vadd.f32 %v72, %v284
    %286 = vmatmul.bf16.gmra.mxu0 %v120
    %v287 = vpop.f32.mrf.mxu0
    %v288 = vadd.f32 %v72, %v287
    %v289 = vpop.f32.mrf.mxu0
    %v290 = vadd.f32 %v72, %v289
    %291 = vmatmul.bf16.gmra.mxu0 %v123
    %v292 = vpop.f32.mrf.mxu0
    %v293 = vadd.f32 %v72, %v292
    %v294 = vpop.f32.mrf.mxu0
    %v295 = vadd.f32 %v72, %v294
    %296 = vmatmul.bf16.gmra.mxu0 %v126
    %v297 = vpop.f32.mrf.mxu0
    %v298 = vadd.f32 %v72, %v297
    %v299 = vpop.f32.mrf.mxu0
    %v300 = vadd.f32 %v72, %v299
    %301 = vmatmul.bf16.gmra.mxu0 %v129
    %v302 = vpop.f32.mrf.mxu0
    %v303 = vadd.f32 %v72, %v302
    %v304 = vpop.f32.mrf.mxu0
    %v305 = vadd.f32 %v72, %v304
    %306 = vmatmul.bf16.gmra.mxu0 %v132
    %v307 = vpop.f32.mrf.mxu0
    %v308 = vadd.f32 %v72, %v307
    %v309 = vpop.f32.mrf.mxu0
    %v310 = vadd.f32 %v72, %v309
    %311 = vdwg.mxu0
    %312 = vst [vmem:[#allocation2] sm:$0xff] %v144
    %313 = vst [vmem:[#allocation2 + $0x8] sm:$0xff] %v146
    %314 = vst [vmem:[#allocation2 + $0x10] sm:$0xff] %v149
    %315 = vst [vmem:[#allocation2 + $0x18] sm:$0xff] %v151
    %316 = vst [vmem:[#allocation2 + $0x20] sm:$0xff] %v154
    %317 = vst [vmem:[#allocation2 + $0x28] sm:$0xff] %v156
    %318 = vst [vmem:[#allocation2 + $0x30] sm:$0xff] %v159
    %319 = vst [vmem:[#allocation2 + $0x38] sm:$0xff] %v161
    %320 = vst [vmem:[#allocation2 + $0x40] sm:$0xff] %v164
    %321 = vst [vmem:[#allocation2 + $0x48] sm:$0xff] %v166
    %322 = vst [vmem:[#allocation2 + $0x50] sm:$0xff] %v169
    %323 = vst [vmem:[#allocation2 + $0x58] sm:$0xff] %v171
    %324 = vst [vmem:[#allocation2 + $0x60] sm:$0xff] %v174
    %325 = vst [vmem:[#allocation2 + $0x68] sm:$0xff] %v176
    %326 = vst [vmem:[#allocation2 + $0x70] sm:$0xff] %v179
    %327 = vst [vmem:[#allocation2 + $0x78] sm:$0xff] %v181
    %328 = vst [vmem:[#allocation2 + $0x80] sm:$0xff] %v184
    %329 = vst [vmem:[#allocation2 + $0x88] sm:$0xff] %v186
    %330 = vst [vmem:[#allocation2 + $0x90] sm:$0xff] %v189
    %331 = vst [vmem:[#allocation2 + $0x98] sm:$0xff] %v191
    %332 = vst [vmem:[#allocation2 + $0xa0] sm:$0xff] %v194
    %333 = vst [vmem:[#allocation2 + $0xa8] sm:$0xff] %v196
    %334 = vst [vmem:[#allocation2 + $0xb0] sm:$0xff] %v199
    %335 = vst [vmem:[#allocation2 + $0xb8] sm:$0xff] %v201
    %336 = vst [vmem:[#allocation2 + $0xc0] sm:$0xff] %v204
    %337 = vst [vmem:[#allocation2 + $0xc8] sm:$0xff] %v206
    %338 = vst [vmem:[#allocation2 + $0xd0] sm:$0xff] %v209
    %339 = vst [vmem:[#allocation2 + $0xd8] sm:$0xff] %v211
    %340 = vst [vmem:[#allocation2 + $0xe0] sm:$0xff] %v214
    %341 = vst [vmem:[#allocation2 + $0xe8] sm:$0xff] %v216
    %342 = vst [vmem:[#allocation2 + $0xf0] sm:$0xff] %v219
    %343 = vst [vmem:[#allocation2 + $0xf8] sm:$0xff] %v221
    %344 = vst [vmem:[#allocation4] sm:$0xff] %v233
    %345 = vst [vmem:[#allocation4 + $0x8] sm:$0xff] %v235
    %346 = vst [vmem:[#allocation4 + $0x10] sm:$0xff] %v238
    %347 = vst [vmem:[#allocation4 + $0x18] sm:$0xff] %v240
    %348 = vst [vmem:[#allocation4 + $0x20] sm:$0xff] %v243
    %349 = vst [vmem:[#allocation4 + $0x28] sm:$0xff] %v245
    %350 = vst [vmem:[#allocation4 + $0x30] sm:$0xff] %v248
    %351 = vst [vmem:[#allocation4 + $0x38] sm:$0xff] %v250
    %352 = vst [vmem:[#allocation4 + $0x40] sm:$0xff] %v253
    %353 = vst [vmem:[#allocation4 + $0x48] sm:$0xff] %v255
    %354 = vst [vmem:[#allocation4 + $0x50] sm:$0xff] %v258
    %355 = vst [vmem:[#allocation4 + $0x58] sm:$0xff] %v260
    %356 = vst [vmem:[#allocation4 + $0x60] sm:$0xff] %v263
    %357 = vst [vmem:[#allocation4 + $0x68] sm:$0xff] %v265
    %358 = vst [vmem:[#allocation4 + $0x70] sm:$0xff] %v268
    %359 = vst [vmem:[#allocation4 + $0x78] sm:$0xff] %v270
    %360 = vst [vmem:[#allocation4 + $0x80] sm:$0xff] %v273
    %361 = vst [vmem:[#allocation4 + $0x88] sm:$0xff] %v275
    %362 = vst [vmem:[#allocation4 + $0x90] sm:$0xff] %v278
    %363 = vst [vmem:[#allocation4 + $0x98] sm:$0xff] %v280
    %364 = vst [vmem:[#allocation4 + $0xa0] sm:$0xff] %v283
    %365 = vst [vmem:[#allocation4 + $0xa8] sm:$0xff] %v285
    %366 = vst [vmem:[#allocation4 + $0xb0] sm:$0xff] %v288
    %367 = vst [vmem:[#allocation4 + $0xb8] sm:$0xff] %v290
    %368 = vst [vmem:[#allocation4 + $0xc0] sm:$0xff] %v293
    %369 = vst [vmem:[#allocation4 + $0xc8] sm:$0xff] %v295
    %370 = vst [vmem:[#allocation4 + $0xd0] sm:$0xff] %v298
    %371 = vst [vmem:[#allocation4 + $0xd8] sm:$0xff] %v300
    %372 = vst [vmem:[#allocation4 + $0xe0] sm:$0xff] %v303
    %373 = vst [vmem:[#allocation4 + $0xe8] sm:$0xff] %v305
    %374 = vst [vmem:[#allocation4 + $0xf0] sm:$0xff] %v308
    %375 = vst [vmem:[#allocation4 + $0xf8] sm:$0xff] %v310
    // Predicated region
    $region14: #{tpu_custom_call.1} parent=1 // pred_check
      _
    $region15: #{tpu_custom_call.1} parent=1 // pred_check_branch
      %377 = sbr.rel (0) target = $region17
    $region16: #{tpu_custom_call.1} parent=1 // pred_region
      %379 = vsyncadd [#allocation3], 0
      %s380 = sshll.u32 [#allocation2], 4
      %s381 = int_to_ptr.vmem [resolvable:$true] %s380
      %s382 = sshll.u32 %s3, 4
      %s383 = int_to_ptr.hbm [resolvable:$true] %s382
      %388 = dma.vmem_to_hbm [thread:$0]  %s381, 4096, %s383, [#allocation3], 128, 128, 8
    $region17: #{tpu_custom_call.1} parent=1 // pred_fallthru
      _
    // Predicated region
    $region18: #{tpu_custom_call.1} parent=1 // pred_check
      _
    $region19: #{tpu_custom_call.1} parent=1 // pred_check_branch
      %390 = sbr.rel (0) target = $region21
    $region20: #{tpu_custom_call.1} parent=1 // pred_region
      %392 = vsyncadd [#allocation5], 0
      %s393 = sshll.u32 [#allocation4], 4
      %s394 = int_to_ptr.vmem [resolvable:$true] %s393
      %s395 = sshll.u32 %s4, 4
      %s396 = int_to_ptr.hbm [resolvable:$true] %s395
      %401 = dma.vmem_to_hbm [thread:$0]  %s394, 4096, %s396, [#allocation5], 128, 128, 8
    $region21: #{tpu_custom_call.1} parent=1 // pred_fallthru
      _
    // Predicated region
    $region22: #{tpu_custom_call.1} parent=1 // pred_check
      _
    $region23: #{tpu_custom_call.1} parent=1 // pred_check_branch
      %403 = sbr.rel (0) target = $region25
    $region24: #{tpu_custom_call.1} parent=1 // pred_region
      %405 = dma.done [#allocation3], 4096
    $region25: #{tpu_custom_call.1} parent=1 // pred_fallthru
      _
    // Predicated region
    $region26: #{tpu_custom_call.1} parent=1 // pred_check
      _
    $region27: #{tpu_custom_call.1} parent=1 // pred_check_branch
      %407 = sbr.rel (0) target = $region29
    $region28: #{tpu_custom_call.1} parent=1 // pred_region
      %409 = dma.done [#allocation5], 4096
    $region29: #{tpu_custom_call.1} parent=1 // pred_fallthru
      _
    %410 = vsyncpa [#allocation3], 1
    %411 = vsyncpa [#allocation5], 1

</llo_original>
